<compile_context>
chip_gen: v7x
topology: tpu7x:2x2x1
jax: 0.10.0
libtpu: 0.0.40
codegen_flags: <defaults>
</compile_context>

<pallas_src>
import functools

import jax
import jax.numpy as jnp
from jax.experimental import pallas as pl
from jax.experimental.pallas import tpu as pltpu

EPS = 1e-5  # nn.LayerNorm default eps


def _layernorm(x, g, b):
    mu = jnp.mean(x, axis=-1, keepdims=True)
    xc = x - mu
    var = jnp.mean(xc * xc, axis=-1, keepdims=True)
    return xc * jax.lax.rsqrt(var + EPS) * g + b


# ---------------------------------------------------------------------------
# Kernel 1: embed = temporal_proj (+ pos_embed + norm_pre), tiled over the
# F_in reduction axis so w_tp never has to fit in VMEM in one piece.
# grid = (batch_tiles, F_in_tiles); the reduction axis is last ("arbitrary").
# ---------------------------------------------------------------------------
def embed_kernel(x2_ref, wtp_ref, pos_ref, preg_ref, preb_ref, o_ref, acc_ref):
    k = pl.program_id(1)

    @pl.when(k == 0)
    def _zero():
        acc_ref[...] = jnp.zeros_like(acc_ref)

    acc_ref[...] += jnp.dot(x2_ref[...], wtp_ref[...],
                            preferred_element_type=jnp.float32)

    @pl.when(k == pl.num_programs(1) - 1)
    def _finish():
        e = acc_ref[...] + pos_ref[...]          # pos pre-tiled to (M_tile, D)
        o_ref[...] = _layernorm(e, preg_ref[...], preb_ref[...])


# ---------------------------------------------------------------------------
# Kernel 2: one transformer Block per grid step along the depth axis.
# grid = (batch_tiles, depth); the residual stream lives in a VMEM scratch
# across the depth sweep and the output is written only on the last layer.
# ---------------------------------------------------------------------------
def block_kernel(xemb_ref, pvec_ref, wqkv_ref, wproj_ref, w1_ref, w2_ref,
                 o_ref, h_ref, *, num_heads, batch_tile, seq_len, compute_dtype):
    l = pl.program_id(1)

    @pl.when(l == 0)
    def _init():
        h_ref[...] = xemb_ref[...]

    x = h_ref[...]                              # (M, D) f32 residual stream
    M, D = x.shape
    H, bt, T = num_heads, batch_tile, seq_len
    Dh = D // H
    hidden = w1_ref.shape[-1]
    scale = Dh ** -0.5

    # packed per-layer 1-D params: [ln1g | ln1b | bqkv | bproj | ln2g | ln2b | b1 | b2]
    p = pvec_ref[...]                           # (1, 9D + hidden)
    ln1g, ln1b = p[:, 0:D], p[:, D:2 * D]
    bqkv = p[:, 2 * D:5 * D]
    bproj = p[:, 5 * D:6 * D]
    ln2g, ln2b = p[:, 6 * D:7 * D], p[:, 7 * D:8 * D]
    b1 = p[:, 8 * D:8 * D + hidden]
    b2 = p[:, 8 * D + hidden:9 * D + hidden]

    # ---------------- attention branch (per batch element, per head) --------
    y = _layernorm(x, ln1g, ln1b)
    qkv = jnp.dot(y.astype(compute_dtype), wqkv_ref[...],
                  preferred_element_type=jnp.float32) + bqkv        # (M, 3D)
    qkv3 = qkv.reshape(bt, T, 3 * D)                                # split rows into (b, t)

    def split_heads(base):
        # (bt, T, 3D) --lane slices / stack--> (H, bt, T, Dh) --outer merge--> (bt*H, T, Dh)
        hs = jnp.stack([qkv3[:, :, base + hh * Dh: base + (hh + 1) * Dh]
                        for hh in range(H)], axis=0)
        return hs.reshape(H * bt, T, Dh).astype(compute_dtype)

    qh = split_heads(0)
    kh = split_heads(D)
    vh = split_heads(2 * D)

    # batched over (head, batch): no cross-batch scores, no block-diag mask.
    s = jnp.einsum("bqd,bkd->bqk", qh, kh,
                   preferred_element_type=jnp.float32) * scale      # (H*bt, T, T)
    s = s - jnp.max(s, axis=-1, keepdims=True)
    pr = jnp.exp(s)
    pr = pr * pl.reciprocal(jnp.sum(pr, axis=-1, keepdims=True), approx=True)
    o = jnp.einsum("bqk,bkd->bqd", pr.astype(compute_dtype), vh,
                   preferred_element_type=jnp.float32)              # (H*bt, T, Dh)

    # heads back onto the lane axis, then ONE full-K output projection matmul.
    o4 = o.reshape(H, bt, T, Dh)                                    # outer-only split
    o_md = jnp.concatenate([o4[hh] for hh in range(H)],
                           axis=-1).reshape(M, D)                   # (M, H*Dh) = (M, D)
    x = x + jnp.dot(o_md.astype(compute_dtype), wproj_ref[...],
                    preferred_element_type=jnp.float32) + bproj

    # ---------------- MLP branch ----------------
    y = _layernorm(x, ln2g, ln2b)
    m = jnp.dot(y.astype(compute_dtype), w1_ref[...],
                preferred_element_type=jnp.float32) + b1
    m = jax.nn.gelu(m, approximate=False)       # exact-erf GELU (nn.GELU parity)
    m = jnp.dot(m.astype(compute_dtype), w2_ref[...],
                preferred_element_type=jnp.float32) + b2
    x = x + m

    h_ref[...] = x

    @pl.when(l == pl.num_programs(1) - 1)
    def _store():
        o_ref[...] = x.astype(o_ref.dtype)


# ---------------------------------------------------------------------------
# Wrapper
# ---------------------------------------------------------------------------
def _pick_batch_tile(B, T, target_rows=512):
    """Largest divisor bt of B with bt*T <= target_rows and (bt*T) % 8 == 0.

    On v7x prefer bt < B so n_tiles >= 2 and both TensorCores get work; on
    v6e grow target_rows (>=640) to cross the weight-streaming roofline.
    """
    for bt in range(B, 0, -1):
        if B % bt:
            continue
        rows = bt * T
        if rows <= target_rows and (rows % 8 == 0 or bt == B):
            return bt
    return B


def vit_forward(x, params, num_heads, *, batch_tile=None, fk_max=2048):
    B, T, num_q, D_in = x.shape
    w_tp = params["w_tp"]
    F_in, D = w_tp.shape
    assert num_q * D_in == F_in, "input feature has wrong size"
    assert params["pos"].shape == (T, D)      # TODO(synk): ragged _pos_embed path
    depth = params["wqkv"].shape[0]
    hidden = params["w1"].shape[-1]
    cdt = params["wqkv"].dtype
    H = num_heads
    assert D % H == 0

    bt = _pick_batch_tile(B, T) if batch_tile is None else batch_tile
    assert B % bt == 0
    n_tiles = B // bt
    M_tile = bt * T
    M_total = B * T
    assert (M_tile % 8 == 0) or (n_tiles == 1), "batch_tile*T must be a multiple of 8"

    # bf16 input stream: halves x2's HBM traffic / VMEM block.
    x2 = x.reshape(M_total, F_in).astype(cdt)

    # ---------------- embed call (hoisted out of the depth loop) ------------
    fk = F_in
    if F_in > fk_max:
        for cand in range(fk_max - fk_max % 128, 0, -128):
            if F_in % cand == 0:
                fk = cand
                break
    k_tiles = F_in // fk
    pos_tiled = jnp.tile(params["pos"].astype(jnp.float32), (bt, 1))   # (M_tile, D)

    x_emb = pl.pallas_call(
        embed_kernel,
        out_shape=jax.ShapeDtypeStruct((M_total, D), jnp.float32),
        grid=(n_tiles, k_tiles),
        in_specs=[
            pl.BlockSpec((M_tile, fk), lambda b, k: (b, k)),   # x2 tile
            pl.BlockSpec((fk, D), lambda b, k: (k, 0)),        # temporal_proj weight slab
            pl.BlockSpec((M_tile, D), lambda b, k: (0, 0)),    # pre-tiled pos_embed
            pl.BlockSpec((1, D), lambda b, k: (0, 0)),         # norm_pre gamma
            pl.BlockSpec((1, D), lambda b, k: (0, 0)),         # norm_pre beta
        ],
        out_specs=pl.BlockSpec((M_tile, D), lambda b, k: (b, 0)),
        scratch_shapes=[pltpu.VMEM((M_tile, D), jnp.float32)],
        compiler_params=pltpu.CompilerParams(
            dimension_semantics=("parallel", "arbitrary")),
        cost_estimate=pl.CostEstimate(
            flops=int(2 * M_total * F_in * D),
            transcendentals=0,
            bytes_accessed=int(x2.nbytes) + int(w_tp.nbytes) + M_total * D * 4),
    )(x2, w_tp, pos_tiled, params["pre_g"], params["pre_b"])

    # ---------------- main call: depth folded into the grid -----------------
    # pack the eight per-layer 1-D params into one lane vector per layer.
    pvec = jnp.concatenate(
        [params[k].astype(jnp.float32) for k in
         ("ln1g", "ln1b", "bqkv", "bproj", "ln2g", "ln2b", "b1", "b2")],
        axis=-1)                                            # (depth, 1, 9D + hidden)
    W_pack = pvec.shape[-1]
    assert W_pack == 9 * D + hidden

    kern = functools.partial(block_kernel, num_heads=H, batch_tile=bt,
                             seq_len=T, compute_dtype=cdt)

    def layer_spec(r, c):
        return pl.BlockSpec((pl.Squeezed(), r, c), lambda b, l: (l, 0, 0))

    in_specs = [
        pl.BlockSpec((M_tile, D), lambda b, l: (b, 0)),     # embedded activations (const over l)
        layer_spec(1, W_pack),                              # packed biases / LN params
        layer_spec(D, 3 * D),                               # wqkv
        layer_spec(D, D),                                   # wproj
        layer_spec(D, hidden),                              # fc1
        layer_spec(hidden, D),                              # fc2
    ]
    out_spec = pl.BlockSpec((M_tile, D), lambda b, l: (b, 0))

    # VMEM budget: double-buffered blocks + scratch + in-kernel intermediates.
    itemsize_w = jnp.dtype(cdt).itemsize
    w_block_bytes = (D * 3 * D + D * D + 2 * D * hidden) * itemsize_w
    in_block_bytes = M_tile * D * 4 + W_pack * 4 + w_block_bytes
    out_block_bytes = M_tile * D * 4
    scratch_bytes = M_tile * D * 4
    inter_bytes = (M_tile * 3 * D * 4                       # qkv f32
                   + 3 * M_tile * D * itemsize_w            # q/k/v head stacks
                   + 2 * bt * H * T * T * 4                 # scores + probs f32
                   + M_tile * D * (4 + itemsize_w)          # attn out (+ bf16 copy)
                   + M_tile * hidden * (4 + itemsize_w)     # MLP hidden f32 + bf16
                   + 3 * M_tile * D * 4)                    # LN / residual temporaries
    vmem_limit = int(2 * (in_block_bytes + out_block_bytes)
                     + scratch_bytes + inter_bytes + (8 << 20))
    # clamp so the request is valid on every generation (v7x physical = 64 MiB);
    # on v5e/v6e (128 MiB) this cap can be raised for bigger M_tile.
    vmem_limit = max(32 << 20, min(vmem_limit, 64 << 20))

    flops = depth * (2 * M_total * (D * 3 * D + D * D + 2 * D * hidden)
                     + 4 * M_total * T * D)
    transcendentals = depth * (M_total * H * T + M_total * hidden)
    w_bytes = (sum(int(params[k].nbytes) for k in ("wqkv", "wproj", "w1", "w2"))
               + int(pvec.nbytes))
    bytes_accessed = 2 * M_total * D * 4 + n_tiles * w_bytes

    out = pl.pallas_call(
        kern,
        out_shape=jax.ShapeDtypeStruct((M_total, D), jnp.float32),
        grid=(n_tiles, depth),
        in_specs=in_specs,
        out_specs=out_spec,
        scratch_shapes=[pltpu.VMEM((M_tile, D), jnp.float32)],
        compiler_params=pltpu.CompilerParams(
            dimension_semantics=("parallel", "arbitrary"),
            vmem_limit_bytes=vmem_limit),
        cost_estimate=pl.CostEstimate(
            flops=int(flops),
            transcendentals=int(transcendentals),
            bytes_accessed=int(bytes_accessed)),
    )(x_emb, pvec, params["wqkv"], params["wproj"], params["w1"], params["w2"])

    return out.reshape(B, T, D)


# ---------------------------------------------------------------------------
# Pure-JAX reference (mirrors the kernel's bf16-operand / f32-accum matmuls)
# ---------------------------------------------------------------------------
def vit_reference(x, params, num_heads):
    B, T, num_q, D_in = x.shape
    w_tp = params["w_tp"]
    D = w_tp.shape[1]
    Dh = D // num_heads
    cdt = w_tp.dtype
    depth = params["wqkv"].shape[0]

    def ln(v, g, b):
        mu = v.mean(-1, keepdims=True)
        xc = v - mu
        var = (xc * xc).mean(-1, keepdims=True)
        return xc * jax.lax.rsqrt(var + EPS) * g + b

    h = jnp.dot(x.reshape(B, T, num_q * D_in).astype(cdt), w_tp,
                preferred_element_type=jnp.float32)
    h = h + params["pos"][None]
    h = ln(h, params["pre_g"], params["pre_b"])
    for l in range(depth):
        y = ln(h, params["ln1g"][l], params["ln1b"][l])
        qkv = jnp.dot(y.astype(cdt), params["wqkv"][l],
                      preferred_element_type=jnp.float32) + params["bqkv"][l]
        q, k, v = jnp.split(qkv, 3, axis=-1)
        q = q.reshape(B, T, num_heads, Dh).transpose(0, 2, 1, 3).astype(cdt)
        k = k.reshape(B, T, num_heads, Dh).transpose(0, 2, 1, 3).astype(cdt)
        v = v.reshape(B, T, num_heads, Dh).transpose(0, 2, 1, 3).astype(cdt)
        s = jnp.einsum("bhqd,bhkd->bhqk", q, k,
                       preferred_element_type=jnp.float32) * (Dh ** -0.5)
        a = jax.nn.softmax(s, axis=-1)
        o = jnp.einsum("bhqk,bhkd->bhqd", a.astype(cdt), v,
                       preferred_element_type=jnp.float32)
        o = o.transpose(0, 2, 1, 3).reshape(B, T, D)
        h = h + jnp.dot(o.astype(cdt), params["wproj"][l],
                        preferred_element_type=jnp.float32) + params["bproj"][l]
        y = ln(h, params["ln2g"][l], params["ln2b"][l])
        m = jnp.dot(y.astype(cdt), params["w1"][l],
                    preferred_element_type=jnp.float32) + params["b1"][l]
        m = jax.nn.gelu(m, approximate=False)
        m = jnp.dot(m.astype(cdt), params["w2"][l],
                    preferred_element_type=jnp.float32) + params["b2"][l]
        h = h + m
    return h


# ---------------------------------------------------------------------------
if __name__ == "__main__":
    # small config consistent with the module (temporal_downrate == 1 path)
    B, num_frms, num_queries = 2, 8, 4
    embed_dim, depth, num_heads, mlp_ratio = 32, 2, 4, 4.0
    hidden = int(embed_dim * mlp_ratio)
    F_in = embed_dim * num_queries   # temporal_proj in_features (downrate==1)

    key = jax.random.PRNGKey(0)
    keys = iter(jax.random.split(key, 64))
    std = 0.02
    wdt = jnp.bfloat16               # weight / matmul-operand dtype (f32 accumulation)

    def nrm(shape, s=std):
        return jax.random.normal(next(keys), shape, jnp.float32) * s

    params = {
        # temporal_proj: Linear(num_q*D -> D, bias=False), stored transposed
        "w_tp": nrm((F_in, embed_dim)).astype(wdt),
        "pos": nrm((num_frms, embed_dim)),                     # pos_embed (1, T, D) squeezed
        "pre_g": 1.0 + nrm((1, embed_dim), 0.1),               # norm_pre
        "pre_b": nrm((1, embed_dim)),
        # per-layer params stacked on a leading "layer" axis
        "ln1g": 1.0 + nrm((depth, 1, embed_dim), 0.1),
        "ln1b": nrm((depth, 1, embed_dim)),
        "wqkv": nrm((depth, embed_dim, 3 * embed_dim)).astype(wdt),
        "bqkv": nrm((depth, 1, 3 * embed_dim)),
        "wproj": nrm((depth, embed_dim, embed_dim)).astype(wdt),
        "bproj": nrm((depth, 1, embed_dim)),
        "ln2g": 1.0 + nrm((depth, 1, embed_dim), 0.1),
        "ln2b": nrm((depth, 1, embed_dim)),
        "w1": nrm((depth, embed_dim, hidden)).astype(wdt),
        "b1": nrm((depth, 1, hidden)),
        "w2": nrm((depth, hidden, embed_dim)).astype(wdt),
        "b2": nrm((depth, 1, embed_dim)),
    }

    # input: (B, T, num_q, embed_dim) as in VisionTransformer.forward
    x = jax.random.normal(next(keys), (B, num_frms, num_queries, embed_dim), jnp.float32)

    ref = vit_reference(x, params, num_heads)

    # default tiling (single batch tile) and multi-tile path (n_tiles = 2,
    # gives the "parallel" grid axis used for v7x megacore sharding).
    out_a = jax.block_until_ready(vit_forward(x, params, num_heads))
    out_b = jax.block_until_ready(vit_forward(x, params, num_heads, batch_tile=1))

    for name, out in (("batch_tile=B", out_a), ("batch_tile=1", out_b)):
        assert out.shape == (B, num_frms, embed_dim)
        max_err = float(jnp.max(jnp.abs(out - ref)))
        assert jnp.allclose(out, ref, atol=5e-3, rtol=5e-3), \
            f"{name}: mismatch vs reference (max |diff| = {max_err})"

    print("KERNEL_OK")
</pallas_src>

<mosaic_0001>
module attributes {stable_mosaic.version = 11 : i64} {
  func.func @embed_kernel(%arg0: i32, %arg1: i32, %arg2: memref<16x128xbf16, #tpu.memory_space<vmem>>, %arg3: memref<128x32xbf16, #tpu.memory_space<vmem>>, %arg4: memref<16x32xf32, #tpu.memory_space<vmem>>, %arg5: memref<1x32xf32, #tpu.memory_space<vmem>>, %arg6: memref<1x32xf32, #tpu.memory_space<vmem>>, %arg7: memref<16x32xf32, #tpu.memory_space<vmem>>, %arg8: memref<16x32xf32, #tpu.memory_space<vmem>>) attributes {dimension_semantics = [#tpu.dimension_semantics<parallel>, #tpu.dimension_semantics<arbitrary>], iteration_bounds = array<i64: 1, 1>, scalar_prefetch = 0 : i64, scratch_operands = 1 : i64, tpu.core_type = #tpu.core_type<tc>, window_params = [{transform_indices = @transform_0, window_bounds = array<i64: 16, 128>}, {transform_indices = @transform_1, window_bounds = array<i64: 128, 32>}, {pipeline_mode = #tpu.pipeline_mode<synchronous>, transform_indices = @transform_2, window_bounds = array<i64: 16, 32>}, {pipeline_mode = #tpu.pipeline_mode<synchronous>, transform_indices = @transform_3, window_bounds = array<i64: 1, 32>}, {pipeline_mode = #tpu.pipeline_mode<synchronous>, transform_indices = @transform_4, window_bounds = array<i64: 1, 32>}, {transform_indices = @transform_5, window_bounds = array<i64: 16, 32>}]} {
    %c0_i32 = arith.constant 0 : i32
    %0 = arith.cmpi eq, %arg1, %c0_i32 : i32
    %1 = arith.extui %0 : i1 to i32
    %c0_i32_0 = arith.constant 0 : i32
    %2 = arith.cmpi ne, %1, %c0_i32_0 : i32
    scf.if %2 {
      %cst_10 = arith.constant 0.000000e+00 : f32
      %12 = vector.broadcast %cst_10 : f32 to vector<16x32xf32>
      %c0_11 = arith.constant 0 : index
      %c0_12 = arith.constant 0 : index
      %13 = vector.load %arg8[%c0_11, %c0_12] : memref<16x32xf32, #tpu.memory_space<vmem>>, vector<16x32xf32>
      tpu.vector_store %arg8[%c0_11, %c0_12], %12 {strides = array<i32>} : memref<16x32xf32, #tpu.memory_space<vmem>>, vector<16x32xf32>,
    } else {
    }
    %c0 = arith.constant 0 : index
    %c0_1 = arith.constant 0 : index
    %3 = vector.load %arg8[%c0, %c0_1] : memref<16x32xf32, #tpu.memory_space<vmem>>, vector<16x32xf32>
    %c0_2 = arith.constant 0 : index
    %c0_3 = arith.constant 0 : index
    %4 = vector.load %arg2[%c0_2, %c0_3] : memref<16x128xbf16, #tpu.memory_space<vmem>>, vector<16x128xbf16>
    %c0_4 = arith.constant 0 : index
    %c0_5 = arith.constant 0 : index
    %5 = vector.load %arg3[%c0_4, %c0_5] : memref<128x32xbf16, #tpu.memory_space<vmem>>, vector<128x32xbf16>
    %cst = arith.constant dense<0.000000e+00> : vector<16x32xf32>
    %6 = tpu.matmul %4, %5, %cst {dimension_numbers = #tpu.dot_dimension_numbers<[1], [0], [0], [1], [0, 0, 1, 1], [], []>} : vector<16x128xbf16>, vector<128x32xbf16>, vector<16x32xf32> -> vector<16x32xf32>
    %7 = arith.addf %3, %6 : vector<16x32xf32>
    %c0_6 = arith.constant 0 : index
    %c0_7 = arith.constant 0 : index
    %8 = vector.load %arg8[%c0_6, %c0_7] : memref<16x32xf32, #tpu.memory_space<vmem>>, vector<16x32xf32>
    tpu.vector_store %arg8[%c0_6, %c0_7], %7 {strides = array<i32>} : memref<16x32xf32, #tpu.memory_space<vmem>>, vector<16x32xf32>,
    %c0_i32_8 = arith.constant 0 : i32
    %9 = arith.cmpi eq, %arg1, %c0_i32_8 : i32
    %10 = arith.extui %9 : i1 to i32
    %c0_i32_9 = arith.constant 0 : i32
    %11 = arith.cmpi ne, %10, %c0_i32_9 : i32
    scf.if %11 {
      %c0_10 = arith.constant 0 : index
      %c0_11 = arith.constant 0 : index
      %12 = vector.load %arg8[%c0_10, %c0_11] : memref<16x32xf32, #tpu.memory_space<vmem>>, vector<16x32xf32>
      %c0_12 = arith.constant 0 : index
      %c0_13 = arith.constant 0 : index
      %13 = vector.load %arg4[%c0_12, %c0_13] : memref<16x32xf32, #tpu.memory_space<vmem>>, vector<16x32xf32>
      %14 = arith.addf %12, %13 : vector<16x32xf32>
      %c0_14 = arith.constant 0 : index
      %c0_15 = arith.constant 0 : index
      %15 = vector.load %arg5[%c0_14, %c0_15] : memref<1x32xf32, #tpu.memory_space<vmem>>, vector<1x32xf32>
      %c0_16 = arith.constant 0 : index
      %c0_17 = arith.constant 0 : index
      %16 = vector.load %arg6[%c0_16, %c0_17] : memref<1x32xf32, #tpu.memory_space<vmem>>, vector<1x32xf32>
      %cst_18 = arith.constant dense<0.000000e+00> : vector<16xf32>
      %17 = vector.multi_reduction <add>, %14, %cst_18 [1] : vector<16x32xf32> to vector<16xf32>
      %18 = vector.shape_cast %17 : vector<16xf32> to vector<16x1xf32>
      %cst_19 = arith.constant 3.200000e+01 : f32
      %19 = vector.broadcast %cst_19 : f32 to vector<16x1xf32>
      %20 = arith.divf %18, %19 : vector<16x1xf32>
      %21 = vector.broadcast %20 : vector<16x1xf32> to vector<16x32xf32>
      %22 = arith.subf %14, %21 : vector<16x32xf32>
      %23 = arith.mulf %22, %22 : vector<16x32xf32>
      %cst_20 = arith.constant dense<0.000000e+00> : vector<16xf32>
      %24 = vector.multi_reduction <add>, %23, %cst_20 [1] : vector<16x32xf32> to vector<16xf32>
      %25 = vector.shape_cast %24 : vector<16xf32> to vector<16x1xf32>
      %cst_21 = arith.constant 3.200000e+01 : f32
      %26 = vector.broadcast %cst_21 : f32 to vector<16x1xf32>
      %27 = arith.divf %25, %26 : vector<16x1xf32>
      %cst_22 = arith.constant 9.99999974E-6 : f32
      %28 = vector.broadcast %cst_22 : f32 to vector<16x1xf32>
      %29 = arith.addf %27, %28 : vector<16x1xf32>
      %30 = math.rsqrt %29 : vector<16x1xf32>
      %31 = vector.broadcast %30 : vector<16x1xf32> to vector<16x32xf32>
      %32 = arith.mulf %22, %31 : vector<16x32xf32>
      %33 = vector.broadcast %15 : vector<1x32xf32> to vector<16x32xf32>
      %34 = arith.mulf %32, %33 : vector<16x32xf32>
      %35 = vector.broadcast %16 : vector<1x32xf32> to vector<16x32xf32>
      %36 = arith.addf %34, %35 : vector<16x32xf32>
      %c0_23 = arith.constant 0 : index
      %c0_24 = arith.constant 0 : index
      %37 = vector.load %arg7[%c0_23, %c0_24] : memref<16x32xf32, #tpu.memory_space<vmem>>, vector<16x32xf32>
      tpu.vector_store %arg7[%c0_23, %c0_24], %36 {strides = array<i32>} : memref<16x32xf32, #tpu.memory_space<vmem>>, vector<16x32xf32>,
    } else {
    }
    return
  }
  func.func @transform_0(%arg0: i32, %arg1: i32) -> (i32, i32) {
    %c0_i32 = arith.constant 0 : i32
    return %arg0, %arg1 : i32, i32
  }
  func.func @transform_1(%arg0: i32, %arg1: i32) -> (i32, i32) {
    %c0_i32 = arith.constant 0 : i32
    %c0_i32_0 = arith.constant 0 : i32
    return %arg1, %c0_i32 : i32, i32
  }
  func.func @transform_2(%arg0: i32, %arg1: i32) -> (i32, i32) {
    %c0_i32 = arith.constant 0 : i32
    %c0_i32_0 = arith.constant 0 : i32
    %c0_i32_1 = arith.constant 0 : i32
    return %c0_i32, %c0_i32_0 : i32, i32
  }
  func.func @transform_3(%arg0: i32, %arg1: i32) -> (i32, i32) {
    %c0_i32 = arith.constant 0 : i32
    %c0_i32_0 = arith.constant 0 : i32
    %c0_i32_1 = arith.constant 0 : i32
    return %c0_i32, %c0_i32_0 : i32, i32
  }
  func.func @transform_4(%arg0: i32, %arg1: i32) -> (i32, i32) {
    %c0_i32 = arith.constant 0 : i32
    %c0_i32_0 = arith.constant 0 : i32
    %c0_i32_1 = arith.constant 0 : i32
    return %c0_i32, %c0_i32_0 : i32, i32
  }
  func.func @transform_5(%arg0: i32, %arg1: i32) -> (i32, i32) {
    %c0_i32 = arith.constant 0 : i32
    %c0_i32_0 = arith.constant 0 : i32
    return %arg0, %c0_i32 : i32, i32
  }
}

</mosaic_0001>

<llo_original>
// kernel: tpu_custom_call.1
$region0: #{tpu_custom_call.1}
  #allocation0 [shape = 'u32[]', space=smem, size = 0x4, offset = 0x4, fixed_abs, tag = 'smem constant byte address 0x4 - core index']
  #allocation1 [shape = 'u32[144,128]{1,0:T(1,128)}', space=vmem, size = 0x12000, scoped, tag = 'internal scratch']
  #allocation2 [shape = 'f32[16,32]{1,0:T(8,128)}', space=vmem, size = 0x2000, scoped, tag = 'scratch operand']
  %s0 = inlined_call_operand.vmem [shape: bf16[16,128], index: 0, kind: input, shape index: {}]
  %s1 = inlined_call_operand.vmem [shape: bf16[128,32], index: 1, kind: input, shape index: {}]
  %s2 = inlined_call_operand.vmem [shape: f32[16,32], index: 2, kind: input, shape index: {}]
  %s3 = inlined_call_operand.vmem [shape: f32[1,32], index: 3, kind: input, shape index: {}]
  %s4 = inlined_call_operand.vmem [shape: f32[1,32], index: 4, kind: input, shape index: {}]
  %s5 = inlined_call_operand.hbm [shape: f32[16,32], index: 5, kind: output, shape index: {}]
  %s6 = sld [smem:[#allocation0]]
  $region38: #{tpu_custom_call.1} parent=0
    _
  %s8 = ssub.s32 1, %s6
  %s9 = scalar_select 0, %s8, %s6
  $region1: #{tpu_custom_call.1} parent=0
    #allocation3 [shape = 'u8[8192]{0}', space=vmem, size = 0x2000, scoped, tag = 'output window, operand 0, single buffered']
    #allocation4 [shape = 's32[1]{0}', space=sflag, size = 0x4, scoped, tag = 'scoped memory for tpu_custom_call.1']
    %10 = vsyncpa [#allocation4], 0
    // Predicated region
    $region2: #{tpu_custom_call.1} parent=1 // pred_check
      _
    $region3: #{tpu_custom_call.1} parent=1 // pred_check_branch
      %12 = sbr.rel (0) target = $region5
    $region4: #{tpu_custom_call.1} parent=1 // pred_region
      _
    $region5: #{tpu_custom_call.1} parent=1 // pred_fallthru
      _
    // Predicated region
    $region6: #{tpu_custom_call.1} parent=1 // pred_check
      _
    $region7: #{tpu_custom_call.1} parent=1 // pred_check_branch
      %14 = sbr.rel (0) target = $region9
    $region8: #{tpu_custom_call.1} parent=1 // pred_region
      _
    $region9: #{tpu_custom_call.1} parent=1 // pred_fallthru
      _
    // Predicated region
    $region10: #{tpu_custom_call.1} parent=1 // pred_check
      _
    $region11: #{tpu_custom_call.1} parent=1 // pred_check_branch
      %16 = sbr.rel (0) target = $region13
    $region12: #{tpu_custom_call.1} parent=1 // pred_region
      _
    $region13: #{tpu_custom_call.1} parent=1 // pred_fallthru
      _
    // Predicated region
    $region14: #{tpu_custom_call.1} parent=1 // pred_check
      _
    $region15: #{tpu_custom_call.1} parent=1 // pred_check_branch
      %18 = sbr.rel (0) target = $region17
    $region16: #{tpu_custom_call.1} parent=1 // pred_region
      _
    $region17: #{tpu_custom_call.1} parent=1 // pred_fallthru
      _
    // Predicated region
    $region18: #{tpu_custom_call.1} parent=1 // pred_check
      _
    $region19: #{tpu_custom_call.1} parent=1 // pred_check_branch
      %20 = sbr.rel (0) target = $region21
    $region20: #{tpu_custom_call.1} parent=1 // pred_region
      _
    $region21: #{tpu_custom_call.1} parent=1 // pred_fallthru
      _
    %p22 = scmp.eq.s32.totalorder 0, 0
    // Predicated region
    $region22: #{tpu_custom_call.1} parent=1 // pred_check
      %p23 = pneg %p22
    $region23: #{tpu_custom_call.1} parent=1 // pred_check_branch
      %25 = sbr.rel (%p23) target = $region25
    $region24: #{tpu_custom_call.1} parent=1 // pred_region
      %vm26 = vcmask 261120
      %27 = vst.msk [vmem:[#allocation2] sm:$0xff] %vm26, 0.0
      %28 = vst.msk [vmem:[#allocation2 + $0x8] sm:$0xff] %vm26, 0.0
    $region25: #{tpu_custom_call.1} parent=1 // pred_fallthru
      _
    %v29 = vld [vmem:[#allocation2] sm:$0xff]
    %v30 = vld [vmem:[#allocation2 + $0x8] sm:$0xff]
    %v31 = vld [vmem:[%s0] sm:$0xf]
    %v32 = vld [vmem:[%s0 + $0x4] sm:$0xf]
    %v33 = vld [vmem:[%s1] sm:$0xf]
    %v34 = vld [vmem:[%s1 + $0x4] sm:$0xf]
    %v35 = vld [vmem:[%s1 + $0x8] sm:$0xf]
    %v36 = vld [vmem:[%s1 + $0xc] sm:$0xf]
    %v37 = vld [vmem:[%s1 + $0x10] sm:$0xf]
    %v38 = vld [vmem:[%s1 + $0x14] sm:$0xf]
    %v39 = vld [vmem:[%s1 + $0x18] sm:$0xf]
    %v40 = vld [vmem:[%s1 + $0x1c] sm:$0xf]
    %v41 = vld [vmem:[%s1 + $0x20] sm:$0xf]
    %v42 = vld [vmem:[%s1 + $0x24] sm:$0xf]
    %v43 = vld [vmem:[%s1 + $0x28] sm:$0xf]
    %v44 = vld [vmem:[%s1 + $0x2c] sm:$0xf]
    %v45 = vld [vmem:[%s1 + $0x30] sm:$0xf]
    %v46 = vld [vmem:[%s1 + $0x34] sm:$0xf]
    %v47 = vld [vmem:[%s1 + $0x38] sm:$0xf]
    %v48 = vld [vmem:[%s1 + $0x3c] sm:$0xf]
    %v51 = vunpack.c.l.b16 %v31
    %v52 = vunpack.c.l.b16 %v32
    %v53 = vpack.c.b16 %v52, %v51
    %v71 = vunpack.c.l.b16 %v33
    %v72 = vunpack.c.l.b16 %v34
    %v73 = vunpack.c.l.b16 %v35
    %v74 = vunpack.c.l.b16 %v36
    %v75 = vunpack.c.l.b16 %v37
    %v76 = vunpack.c.l.b16 %v38
    %v77 = vunpack.c.l.b16 %v39
    %v78 = vunpack.c.l.b16 %v40
    %v79 = vunpack.c.l.b16 %v41
    %v80 = vunpack.c.l.b16 %v42
    %v81 = vunpack.c.l.b16 %v43
    %v82 = vunpack.c.l.b16 %v44
    %v83 = vunpack.c.l.b16 %v45
    %v84 = vunpack.c.l.b16 %v46
    %v85 = vunpack.c.l.b16 %v47
    %v86 = vunpack.c.l.b16 %v48
    %v87 = vpack.c.b16 %v72, %v71
    %v88 = vpack.c.b16 %v74, %v73
    %v89 = vpack.c.b16 %v76, %v75
    %v90 = vpack.c.b16 %v78, %v77
    %v91 = vpack.c.b16 %v80, %v79
    %v92 = vpack.c.b16 %v82, %v81
    %v93 = vpack.c.b16 %v84, %v83
    %v94 = vpack.c.b16 %v86, %v85
    %103 = vmatprep.subr.bf16.mxu0 0
    %104 = vmatpush1.bf16.msra.mxu0 %v87
    %105 = vmatprep.subr.bf16.mxu0 0
    %106 = vmatpush1.bf16.msra.mxu0 %v88
    %107 = vmatprep.subr.bf16.mxu0 0
    %108 = vmatpush1.bf16.msra.mxu0 %v89
    %109 = vmatprep.subr.bf16.mxu0 0
    %110 = vmatpush1.bf16.msra.mxu0 %v90
    %111 = vmatprep.subr.bf16.mxu0 0
    %112 = vmatpush1.bf16.msra.mxu0 %v91
    %113 = vmatprep.subr.bf16.mxu0 0
    %114 = vmatpush1.bf16.msra.mxu0 %v92
    %115 = vmatprep.subr.bf16.mxu0 0
    %116 = vmatpush1.bf16.msra.mxu0 %v93
    %117 = vmatprep.subr.bf16.mxu0 0
    %118 = vmatpush1.bf16.msra.mxu0 %v94
    %119 = vmatprep.subr.bf16.mxu0 0
    %120 = vmatpush1.bf16.msra.mxu0 0
    %121 = vmatprep.subr.bf16.mxu0 0
    %122 = vmatpush1.bf16.msra.mxu0 0
    %123 = vmatprep.subr.bf16.mxu0 0
    %124 = vmatpush1.bf16.msra.mxu0 0
    %125 = vmatprep.subr.bf16.mxu0 0
    %126 = vmatpush1.bf16.msra.mxu0 0
    %127 = vmatprep.subr.bf16.mxu0 0
    %128 = vmatpush1.bf16.msra.mxu0 0
    %129 = vmatprep.subr.bf16.mxu0 0
    %130 = vmatpush1.bf16.msra.mxu0 0
    %131 = vmatprep.subr.bf16.mxu0 0
    %132 = vmatpush1.bf16.msra.mxu0 0
    %133 = vmatprep.subr.bf16.mxu0 0
    %134 = vmatpush1.bf16.msra.mxu0 0
    %135 = vmatprep.mubr.bf16.mxu0 0
    %136 = vmatmul.mubr.bf16.gmra.mrb[0].mxu0 %v53
    %v137 = vpop.f32.mrb[0].mxu0
    %v138 = vadd.f32 0.0, %v137
    %v139 = vpop.f32.mrb[0].mxu0
    %v140 = vpop.f32.mrb[0].mxu0
    %v141 = vadd.f32 0.0, %v140
    %v142 = vpop.f32.mrb[0].mxu0
    %143 = vdwg.mxu0
    %v144 = vadd.f32 %v29, %v138
    %v145 = vadd.f32 %v30, %v141
    %vm146 = vcmask 261120
    %147 = vst.msk [vmem:[#allocation2] sm:$0xff] %vm146, %v144
    %148 = vst.msk [vmem:[#allocation2 + $0x8] sm:$0xff] %vm146, %v145
    // Predicated region
    $region26: #{tpu_custom_call.1} parent=1 // pred_check
      %p149 = pneg %p22
    $region27: #{tpu_custom_call.1} parent=1 // pred_check_branch
      %151 = sbr.rel (%p149) target = $region29
    $region28: #{tpu_custom_call.1} parent=1 // pred_region
      %v152 = vld [vmem:[#allocation2] sm:$0xff]
      %v153 = vld [vmem:[#allocation2 + $0x8] sm:$0xff]
      %v154 = vld [vmem:[%s2] sm:$0xff]
      %v155 = vld [vmem:[%s2 + $0x8] sm:$0xff]
      %v156 = vadd.f32 %v152, %v154
      %v157 = vadd.f32 %v153, %v155
      %v158 = vld [vmem:[%s3] sm:$0x1]
      %v159 = vld [vmem:[%s4] sm:$0x1]
      %v160 = vsel %vm146, %v156, 0.0
      %161 = vadd.xlane.f32.xlu0 %v160
      %v162 = vpop.xlane.xlu0 %161
      %v163 = vsel %vm146, %v157, 0.0
      %164 = vadd.xlane.f32.xlu0 %v163
      %v165 = vpop.xlane.xlu0 %164
      %v166 = vrcp.pop 32.0
      %v167 = vmul.f32 %v162, %v166
      %v168 = vmul.f32 %v165, %v166
      %v169 = vsub.f32 %v156, %v167
      %v170 = vsub.f32 %v157, %v168
      %v171 = vmul.f32 %v169, %v169
      %v172 = vmul.f32 %v170, %v170
      %v173 = vsel %vm146, %v171, 0.0
      %174 = vadd.xlane.f32.xlu0 %v173
      %v175 = vpop.xlane.xlu0 %174
      %v176 = vsel %vm146, %v172, 0.0
      %177 = vadd.xlane.f32.xlu0 %v176
      %v178 = vpop.xlane.xlu0 %177
      %v179 = vmul.f32 %v175, %v166
      %v180 = vmul.f32 %v178, %v166
      %v181 = vadd.f32 %v179, 1e-05
      %v182 = vadd.f32 %v180, 1e-05
      %v183 = vrsqrt.pop %v181
      %v184 = vrsqrt.pop %v182
      %v185 = vmul.f32 %v169, %v183
      %v186 = vmul.f32 %v170, %v184
      %v188 = vlaneseq
      %v189 = vshrl.u32 %v188, 7
      %v190 = vsub.s32 0, %v189
      %v191 = vrot.slane %v158, %v190
      %v193 = vmul.f32 %v185, %v191
      %v194 = vmul.f32 %v186, %v191
      %v196 = vlaneseq
      %v197 = vshrl.u32 %v196, 7
      %v198 = vsub.s32 0, %v197
      %v199 = vrot.slane %v159, %v198
      %v201 = vadd.f32 %v193, %v199
      %v202 = vadd.f32 %v194, %v199
      %203 = vst.msk [vmem:[#allocation3] sm:$0xff] %vm146, %v201
      %204 = vst.msk [vmem:[#allocation3 + $0x8] sm:$0xff] %vm146, %v202
    $region29: #{tpu_custom_call.1} parent=1 // pred_fallthru
      _
    // Predicated region
    $region30: #{tpu_custom_call.1} parent=1 // pred_check
      _
    $region31: #{tpu_custom_call.1} parent=1 // pred_check_branch
      %206 = sbr.rel (0) target = $region33
    $region32: #{tpu_custom_call.1} parent=1 // pred_region
      %s208 = ssub.s32 256, 256
      %209 = vsyncadd [#allocation4], %s208
      %s210 = sshll.u32 [#allocation3], 4
      %s211 = int_to_ptr.vmem [resolvable:$true] %s210
      %216 = dma.vmem_to_hbm [thread:$0]  %s211, 256, %s5, [#allocation4], 128, 128, 8
    $region33: #{tpu_custom_call.1} parent=1 // pred_fallthru
      _
    // Predicated region
    $region34: #{tpu_custom_call.1} parent=1 // pred_check
      _
    $region35: #{tpu_custom_call.1} parent=1 // pred_check_branch
      %218 = sbr.rel (0) target = $region37
    $region36: #{tpu_custom_call.1} parent=1 // pred_region
      %219 = dma.done [#allocation4], 256
    $region37: #{tpu_custom_call.1} parent=1 // pred_fallthru
      _
    %220 = vsyncpa [#allocation4], 1

</llo_original>
